<compile_context>
chip_gen: v7x
topology: tpu7x:2x2x1
jax: 0.10.0
libtpu: 0.0.40
codegen_flags: <defaults>
</compile_context>

<pallas_src>
import functools
import math

import jax
import jax.numpy as jnp
from jax import lax
from jax.experimental import pallas as pl
from jax.experimental.pallas import tpu as pltpu


def _round_up(x, m):
    return ((x + m - 1) // m) * m


def _pow2_floor(x):
    return 1 << int(math.floor(math.log2(x))) if x >= 1 else 1


def _chip_budget():
    """Returns (per-input block byte budget, scoped vmem_limit_bytes)."""
    small = (4 * 1024 * 1024, 32 * 1024 * 1024)   # safe on v7x (64 MiB VMEM per TC)
    big = (8 * 1024 * 1024, 64 * 1024 * 1024)     # v5e / v6e (128 MiB VMEM)
    try:
        info = pltpu.get_tpu_info()
        vmem = getattr(info, "vmem_capacity_bytes", None)
        if vmem is not None and vmem >= 100 * 1024 * 1024:
            return big
    except Exception:
        pass
    return small


def _ftnmt_kernel(p_ref, l_ref, o_ref, pl_acc, q_acc, s_acc, *,
                  depth, scale, smooth, hw, tk, n_k, tile_r, r_ch, c_ch):
    k = pl.program_id(1)
    f32 = jnp.float32
    n_r_ch = tile_r // r_ch

    @pl.when(k == 0)
    def _init():
        pl_acc[...] = jnp.zeros_like(pl_acc)
        q_acc[...] = jnp.zeros_like(q_acc)
        s_acc[...] = jnp.zeros_like(s_acc)

    def fold128(x):
        # (rows, w) -> (rows, 128) with w = 128 * 2^m: pure VPU halving adds, no XLU.
        w = x.shape[-1]
        while w > 128:
            w //= 2
            x = x[:, :w] + x[:, w:]
        return x

    def accum(rows, p, l):
        w = p.shape[-1]
        g = w // 128
        if w % 128 == 0 and g > 0 and (g & (g - 1)) == 0:
            pl_acc[rows, :] += fold128(p * l)
            q_acc[rows, :] += fold128(p * p + l * l)
            s_acc[rows, :] += fold128(p + l)
        else:
            # Ragged tail: static width, runs at most once per row chunk per row block.
            lane0 = pl.ds(0, 1)
            pl_acc[rows, lane0] += jnp.sum(p * l, axis=-1, keepdims=True)
            q_acc[rows, lane0] += jnp.sum(p * p + l * l, axis=-1, keepdims=True)
            s_acc[rows, lane0] += jnp.sum(p + l, axis=-1, keepdims=True)

    def row_block(r0, width):
        rows = pl.ds(r0, r_ch)
        n_c = width // c_ch
        for jc in range(n_c):        # static unroll; bounded (<= 64) by the tiling choice
            cols = pl.ds(jc * c_ch, c_ch)
            accum(rows, p_ref[rows, cols].astype(f32), l_ref[rows, cols].astype(f32))
        w_tail = width - n_c * c_ch
        if w_tail > 0:
            cols = pl.ds(n_c * c_ch, w_tail)
            accum(rows, p_ref[rows, cols].astype(f32), l_ref[rows, cols].astype(f32))

    def process(width):
        if n_r_ch > 1:
            def body(jr, carry):
                row_block(pl.multiple_of(jr * r_ch, r_ch), width)
                return carry
            lax.fori_loop(0, n_r_ch, body, 0)
        else:
            row_block(0, width)

    last_w = hw - (n_k - 1) * tk
    if last_w == tk:
        process(tk)
    else:
        @pl.when(k < n_k - 1)
        def _steady():
            process(tk)

        @pl.when(k == n_k - 1)
        def _tail():
            process(last_w)

    @pl.when(k == n_k - 1)
    def _finalize():
        # Single cross-lane (XLU) reduction per row block, outside the steady-state loop.
        tpl = jnp.sum(pl_acc[...], axis=-1, keepdims=True)   # Σ p·l
        tq = jnp.sum(q_acc[...], axis=-1, keepdims=True)     # Σ p² + l²
        ts = jnp.sum(s_acc[...], axis=-1, keepdims=True)     # Σ p + l
        hw_f = float(hw)
        # Complement sums derived algebraically (no second pass over the data).
        # TODO(synk): if p,l ~ 1 over very large HW matters, accumulate the complement sums
        # directly to avoid f32 cancellation; float(hw) also loses exactness for HW > 2^24.
        tpl_c = hw_f - ts + tpl
        tq_c = 2.0 * hw_f - 2.0 * ts + tq

        def tanimoto(t_pl, t_q):
            num = t_pl + smooth
            den = jnp.zeros_like(t_pl)
            for d in range(depth):    # static unroll; depth is a Python int
                a = 2.0 ** d
                b = -(2.0 * a - 1.0)
                den = den + 1.0 / (a * t_q + b * t_pl + smooth)
            return num * den * scale

        res = 0.5 * (tanimoto(tpl, tq) + tanimoto(tpl_c, tq_c))
        o_ref[...] = res.astype(o_ref.dtype)


def ftanimoto(preds, labels, *, depth=5, smooth=1e-05):
    """Fractal Tanimoto with complement. preds/labels: (B, C, H, W). Returns (B, C, 1, 1)."""
    assert preds.shape == labels.shape
    assert depth >= 0, "Expecting depth >= 0, aborting ..."
    if depth == 0:
        eff_depth, scale = 1, 1.0
    else:
        eff_depth, scale = depth, 1.0 / depth

    B, C, H, W = preds.shape
    BC, HW = B * C, H * W
    p2 = preds.reshape(BC, HW)
    l2 = labels.reshape(BC, HW)

    itemsize = jnp.dtype(preds.dtype).itemsize
    SUB = 8 if itemsize >= 4 else 16          # min sublane tile (f32 vs bf16/fp16)
    LANE = 128

    block_bytes, vmem_limit = _chip_budget()

    # Sub-tile processed per inner step: (r_ch, c_ch) ~ 8K elements (bounded vreg pressure).
    r_ch = BC if BC < SUB else SUB
    c_ch = LANE * _pow2_floor(max(1, (8192 // max(1, r_ch)) // LANE))
    MAX_CHUNKS = 64                            # bound on the static lane-chunk unroll
    tk_cap = MAX_CHUNKS * c_ch
    MAX_TILE_R = 4096                          # bounds accumulator scratch (<= 6 MiB)

    padded_hw = _round_up(HW, LANE)
    padded_r_min = max(SUB, r_ch)

    if HW <= tk_cap and padded_r_min * padded_hw * itemsize <= block_bytes:
        # Whole reduction in one block per row tile; fill the block budget with rows.
        tk = HW
        rows_fit = max(SUB, (block_bytes // (padded_hw * itemsize)) // SUB * SUB)
    else:
        # Split the reduction across the last ("arbitrary") grid axis.
        lanes_budget = block_bytes // (padded_r_min * itemsize)
        tk = min(tk_cap, max(c_ch, (lanes_budget // c_ch) * c_ch))
        rows_fit = max(SUB, (block_bytes // (tk * itemsize)) // SUB * SUB)

    tile_r = min(_round_up(BC, SUB), rows_fit, MAX_TILE_R)
    if BC < SUB:
        tile_r = BC
    # Keep >= 2 "parallel" row blocks when the row extent allows it (megacore / v7x dual TC).
    if tile_r >= BC and BC >= 2 * SUB:
        tile_r = _round_up(pl.cdiv(BC, 2), SUB)
    # TODO(synk): for BC <= SUB with huge HW, a 2-way reduction split (per-core partials +
    # tiny combine pass) would engage the second TensorCore on v7x; not implemented here.

    n_k = pl.cdiv(HW, tk)
    n_r = pl.cdiv(BC, tile_r)
    grid = (n_r, n_k)

    kernel = functools.partial(
        _ftnmt_kernel,
        depth=eff_depth, scale=scale, smooth=float(smooth),
        hw=HW, tk=tk, n_k=n_k, tile_r=tile_r, r_ch=r_ch, c_ch=c_ch,
    )

    cost = pl.CostEstimate(
        flops=8 * BC * HW + 24 * eff_depth * BC,
        transcendentals=0,
        bytes_accessed=2 * BC * HW * itemsize + BC * 4,
    )

    out = pl.pallas_call(
        kernel,
        out_shape=jax.ShapeDtypeStruct((BC, 1), jnp.float32),
        grid_spec=pltpu.PrefetchScalarGridSpec(
            num_scalar_prefetch=0,
            grid=grid,
            in_specs=[
                pl.BlockSpec((tile_r, tk), lambda i, k: (i, k)),
                pl.BlockSpec((tile_r, tk), lambda i, k: (i, k)),
            ],
            out_specs=pl.BlockSpec((tile_r, 1), lambda i, k: (i, 0)),
            scratch_shapes=[pltpu.VMEM((tile_r, 128), jnp.float32)] * 3,
        ),
        compiler_params=pltpu.CompilerParams(
            dimension_semantics=("parallel", "arbitrary"),
            vmem_limit_bytes=vmem_limit,
        ),
        cost_estimate=cost,
    )(p2, l2)

    return out.reshape(B, C, 1, 1).astype(preds.dtype)


def _ftanimoto_ref(preds, labels, *, depth=5, smooth=1e-05):
    """Pure-JAX reference mirroring the PyTorch module."""
    if depth == 0:
        eff_depth, scale = 1, 1.0
    else:
        eff_depth, scale = depth, 1.0 / depth

    def inner_prod(a, b):
        return jnp.sum(a * b, axis=(2, 3), keepdims=True)

    def tnmt_base(p, l):
        tpl = inner_prod(p, l)
        tpp = inner_prod(p, p)
        tll = inner_prod(l, l)
        num = tpl + smooth
        denum = 0.0
        for d in range(eff_depth):
            a = 2.0 ** d
            b = -(2.0 * a - 1.0)
            denum = denum + 1.0 / (a * (tpp + tll) + b * tpl + smooth)
        return num * denum * scale

    return 0.5 * (tnmt_base(preds, labels) + tnmt_base(1.0 - preds, 1.0 - labels))


def _check(shape, key, atol, rtol):
    k1, k2 = jax.random.split(key)
    preds = jax.random.uniform(k1, shape, dtype=jnp.float32)
    labels = (jax.random.uniform(k2, shape, dtype=jnp.float32) > 0.5).astype(jnp.float32)
    out = jax.block_until_ready(ftanimoto(preds, labels, depth=5, smooth=1e-05))
    ref = _ftanimoto_ref(preds, labels, depth=5, smooth=1e-05)
    assert out.shape == (shape[0], shape[1], 1, 1), out.shape
    assert jnp.allclose(out, ref, atol=atol, rtol=rtol), (
        f"shape={shape} max abs err = {float(jnp.max(jnp.abs(out - ref)))}"
    )


if __name__ == "__main__":
    key = jax.random.PRNGKey(0)
    keys = jax.random.split(key, 4)

    # Primary small shape from the module spec.
    _check((2, 4, 16, 16), keys[0], atol=1e-5, rtol=1e-5)

    # Non-aligned shape: BC < 8 rows, odd HW (exercises the static ragged-tail path).
    _check((1, 3, 7, 5), keys[1], atol=1e-5, rtol=1e-5)

    # BC >= 16: exercises the >=2 parallel row blocks split and the in-kernel row-chunk loop.
    _check((4, 8, 32, 32), keys[2], atol=1e-5, rtol=1e-5)

    # Large HW: exercises the multi-block reduction axis (accumulators across grid steps)
    # and the static lane-chunk fold path.
    _check((1, 8, 256, 512), keys[3], atol=1e-4, rtol=1e-4)

    print("KERNEL_OK")
</pallas_src>

<mosaic_0001>
module attributes {stable_mosaic.version = 11 : i64} {
  func.func @_ftnmt_kernel(%arg0: i32, %arg1: i32, %arg2: memref<8x256xf32, #tpu.memory_space<vmem>>, %arg3: memref<8x256xf32, #tpu.memory_space<vmem>>, %arg4: memref<8x1xf32, #tpu.memory_space<vmem>>, %arg5: memref<8x128xf32, #tpu.memory_space<vmem>>, %arg6: memref<8x128xf32, #tpu.memory_space<vmem>>, %arg7: memref<8x128xf32, #tpu.memory_space<vmem>>) attributes {dimension_semantics = [#tpu.dimension_semantics<parallel>, #tpu.dimension_semantics<arbitrary>], iteration_bounds = array<i64: 1, 1>, scalar_prefetch = 0 : i64, scratch_operands = 3 : i64, tpu.core_type = #tpu.core_type<tc>, window_params = [{transform_indices = @transform_0, window_bounds = array<i64: 8, 256>}, {transform_indices = @transform_1, window_bounds = array<i64: 8, 256>}, {transform_indices = @transform_2, window_bounds = array<i64: 8, 1>}]} {
    %c0_i32 = arith.constant 0 : i32
    %0 = arith.cmpi eq, %arg1, %c0_i32 : i32
    %1 = arith.extui %0 : i1 to i32
    %c0_i32_0 = arith.constant 0 : i32
    %2 = arith.cmpi ne, %1, %c0_i32_0 : i32
    scf.if %2 {
      %cst = arith.constant 0.000000e+00 : f32
      %31 = vector.broadcast %cst : f32 to vector<8x128xf32>
      %c0_18 = arith.constant 0 : index
      %c0_19 = arith.constant 0 : index
      %32 = vector.load %arg5[%c0_18, %c0_19] : memref<8x128xf32, #tpu.memory_space<vmem>>, vector<8x128xf32>
      tpu.vector_store %arg5[%c0_18, %c0_19], %31 {strides = array<i32>} : memref<8x128xf32, #tpu.memory_space<vmem>>, vector<8x128xf32>,
      %cst_20 = arith.constant 0.000000e+00 : f32
      %33 = vector.broadcast %cst_20 : f32 to vector<8x128xf32>
      %c0_21 = arith.constant 0 : index
      %c0_22 = arith.constant 0 : index
      %34 = vector.load %arg6[%c0_21, %c0_22] : memref<8x128xf32, #tpu.memory_space<vmem>>, vector<8x128xf32>
      tpu.vector_store %arg6[%c0_21, %c0_22], %33 {strides = array<i32>} : memref<8x128xf32, #tpu.memory_space<vmem>>, vector<8x128xf32>,
      %cst_23 = arith.constant 0.000000e+00 : f32
      %35 = vector.broadcast %cst_23 : f32 to vector<8x128xf32>
      %c0_24 = arith.constant 0 : index
      %c0_25 = arith.constant 0 : index
      %36 = vector.load %arg7[%c0_24, %c0_25] : memref<8x128xf32, #tpu.memory_space<vmem>>, vector<8x128xf32>
      tpu.vector_store %arg7[%c0_24, %c0_25], %35 {strides = array<i32>} : memref<8x128xf32, #tpu.memory_space<vmem>>, vector<8x128xf32>,
    } else {
    }
    %c0 = arith.constant 0 : index
    %c0_1 = arith.constant 0 : index
    %3 = vector.load %arg2[%c0, %c0_1] : memref<8x256xf32, #tpu.memory_space<vmem>>, vector<8x256xf32>
    %c0_2 = arith.constant 0 : index
    %c0_3 = arith.constant 0 : index
    %4 = vector.load %arg3[%c0_2, %c0_3] : memref<8x256xf32, #tpu.memory_space<vmem>>, vector<8x256xf32>
    %c0_4 = arith.constant 0 : index
    %c0_5 = arith.constant 0 : index
    %5 = vector.load %arg5[%c0_4, %c0_5] : memref<8x128xf32, #tpu.memory_space<vmem>>, vector<8x128xf32>
    %6 = arith.mulf %3, %4 : vector<8x256xf32>
    %7 = vector.extract_strided_slice %6 {offsets = [0, 0], sizes = [8, 128], strides = [1, 1]} : vector<8x256xf32> to vector<8x128xf32>
    %8 = vector.extract_strided_slice %6 {offsets = [0, 128], sizes = [8, 128], strides = [1, 1]} : vector<8x256xf32> to vector<8x128xf32>
    %9 = arith.addf %7, %8 : vector<8x128xf32>
    %10 = arith.addf %5, %9 : vector<8x128xf32>
    %c0_6 = arith.constant 0 : index
    %c0_7 = arith.constant 0 : index
    %11 = vector.load %arg5[%c0_6, %c0_7] : memref<8x128xf32, #tpu.memory_space<vmem>>, vector<8x128xf32>
    tpu.vector_store %arg5[%c0_6, %c0_7], %10 {strides = array<i32>} : memref<8x128xf32, #tpu.memory_space<vmem>>, vector<8x128xf32>,
    %c0_8 = arith.constant 0 : index
    %c0_9 = arith.constant 0 : index
    %12 = vector.load %arg6[%c0_8, %c0_9] : memref<8x128xf32, #tpu.memory_space<vmem>>, vector<8x128xf32>
    %13 = arith.mulf %3, %3 : vector<8x256xf32>
    %14 = arith.mulf %4, %4 : vector<8x256xf32>
    %15 = arith.addf %13, %14 : vector<8x256xf32>
    %16 = vector.extract_strided_slice %15 {offsets = [0, 0], sizes = [8, 128], strides = [1, 1]} : vector<8x256xf32> to vector<8x128xf32>
    %17 = vector.extract_strided_slice %15 {offsets = [0, 128], sizes = [8, 128], strides = [1, 1]} : vector<8x256xf32> to vector<8x128xf32>
    %18 = arith.addf %16, %17 : vector<8x128xf32>
    %19 = arith.addf %12, %18 : vector<8x128xf32>
    %c0_10 = arith.constant 0 : index
    %c0_11 = arith.constant 0 : index
    %20 = vector.load %arg6[%c0_10, %c0_11] : memref<8x128xf32, #tpu.memory_space<vmem>>, vector<8x128xf32>
    tpu.vector_store %arg6[%c0_10, %c0_11], %19 {strides = array<i32>} : memref<8x128xf32, #tpu.memory_space<vmem>>, vector<8x128xf32>,
    %c0_12 = arith.constant 0 : index
    %c0_13 = arith.constant 0 : index
    %21 = vector.load %arg7[%c0_12, %c0_13] : memref<8x128xf32, #tpu.memory_space<vmem>>, vector<8x128xf32>
    %22 = arith.addf %3, %4 : vector<8x256xf32>
    %23 = vector.extract_strided_slice %22 {offsets = [0, 0], sizes = [8, 128], strides = [1, 1]} : vector<8x256xf32> to vector<8x128xf32>
    %24 = vector.extract_strided_slice %22 {offsets = [0, 128], sizes = [8, 128], strides = [1, 1]} : vector<8x256xf32> to vector<8x128xf32>
    %25 = arith.addf %23, %24 : vector<8x128xf32>
    %26 = arith.addf %21, %25 : vector<8x128xf32>
    %c0_14 = arith.constant 0 : index
    %c0_15 = arith.constant 0 : index
    %27 = vector.load %arg7[%c0_14, %c0_15] : memref<8x128xf32, #tpu.memory_space<vmem>>, vector<8x128xf32>
    tpu.vector_store %arg7[%c0_14, %c0_15], %26 {strides = array<i32>} : memref<8x128xf32, #tpu.memory_space<vmem>>, vector<8x128xf32>,
    %c0_i32_16 = arith.constant 0 : i32
    %28 = arith.cmpi eq, %arg1, %c0_i32_16 : i32
    %29 = arith.extui %28 : i1 to i32
    %c0_i32_17 = arith.constant 0 : i32
    %30 = arith.cmpi ne, %29, %c0_i32_17 : i32
    scf.if %30 {
      %c0_18 = arith.constant 0 : index
      %c0_19 = arith.constant 0 : index
      %31 = vector.load %arg5[%c0_18, %c0_19] : memref<8x128xf32, #tpu.memory_space<vmem>>, vector<8x128xf32>
      %cst = arith.constant dense<0.000000e+00> : vector<8xf32>
      %32 = vector.multi_reduction <add>, %31, %cst [1] : vector<8x128xf32> to vector<8xf32>
      %33 = vector.shape_cast %32 : vector<8xf32> to vector<8x1xf32>
      %c0_20 = arith.constant 0 : index
      %c0_21 = arith.constant 0 : index
      %34 = vector.load %arg6[%c0_20, %c0_21] : memref<8x128xf32, #tpu.memory_space<vmem>>, vector<8x128xf32>
      %cst_22 = arith.constant dense<0.000000e+00> : vector<8xf32>
      %35 = vector.multi_reduction <add>, %34, %cst_22 [1] : vector<8x128xf32> to vector<8xf32>
      %36 = vector.shape_cast %35 : vector<8xf32> to vector<8x1xf32>
      %c0_23 = arith.constant 0 : index
      %c0_24 = arith.constant 0 : index
      %37 = vector.load %arg7[%c0_23, %c0_24] : memref<8x128xf32, #tpu.memory_space<vmem>>, vector<8x128xf32>
      %cst_25 = arith.constant dense<0.000000e+00> : vector<8xf32>
      %38 = vector.multi_reduction <add>, %37, %cst_25 [1] : vector<8x128xf32> to vector<8xf32>
      %39 = vector.shape_cast %38 : vector<8xf32> to vector<8x1xf32>
      %cst_26 = arith.constant 2.560000e+02 : f32
      %40 = vector.broadcast %cst_26 : f32 to vector<8x1xf32>
      %41 = arith.subf %40, %39 : vector<8x1xf32>
      %42 = arith.addf %41, %33 : vector<8x1xf32>
      %cst_27 = arith.constant 2.000000e+00 : f32
      %43 = vector.broadcast %cst_27 : f32 to vector<8x1xf32>
      %44 = arith.mulf %43, %39 : vector<8x1xf32>
      %cst_28 = arith.constant 5.120000e+02 : f32
      %45 = vector.broadcast %cst_28 : f32 to vector<8x1xf32>
      %46 = arith.subf %45, %44 : vector<8x1xf32>
      %47 = arith.addf %46, %36 : vector<8x1xf32>
      %cst_29 = arith.constant 9.99999974E-6 : f32
      %48 = vector.broadcast %cst_29 : f32 to vector<8x1xf32>
      %49 = arith.addf %33, %48 : vector<8x1xf32>
      %cst_30 = arith.constant 0.000000e+00 : f32
      %50 = vector.broadcast %cst_30 : f32 to vector<8x1xf32>
      %cst_31 = arith.constant 1.000000e+00 : f32
      %51 = vector.broadcast %cst_31 : f32 to vector<8x1xf32>
      %52 = arith.mulf %51, %36 : vector<8x1xf32>
      %cst_32 = arith.constant -1.000000e+00 : f32
      %53 = vector.broadcast %cst_32 : f32 to vector<8x1xf32>
      %54 = arith.mulf %53, %33 : vector<8x1xf32>
      %55 = arith.addf %52, %54 : vector<8x1xf32>
      %cst_33 = arith.constant 9.99999974E-6 : f32
      %56 = vector.broadcast %cst_33 : f32 to vector<8x1xf32>
      %57 = arith.addf %55, %56 : vector<8x1xf32>
      %cst_34 = arith.constant 1.000000e+00 : f32
      %58 = vector.broadcast %cst_34 : f32 to vector<8x1xf32>
      %59 = arith.divf %58, %57 : vector<8x1xf32>
      %60 = arith.addf %50, %59 : vector<8x1xf32>
      %cst_35 = arith.constant 2.000000e+00 : f32
      %61 = vector.broadcast %cst_35 : f32 to vector<8x1xf32>
      %62 = arith.mulf %61, %36 : vector<8x1xf32>
      %cst_36 = arith.constant -3.000000e+00 : f32
      %63 = vector.broadcast %cst_36 : f32 to vector<8x1xf32>
      %64 = arith.mulf %63, %33 : vector<8x1xf32>
      %65 = arith.addf %62, %64 : vector<8x1xf32>
      %cst_37 = arith.constant 9.99999974E-6 : f32
      %66 = vector.broadcast %cst_37 : f32 to vector<8x1xf32>
      %67 = arith.addf %65, %66 : vector<8x1xf32>
      %cst_38 = arith.constant 1.000000e+00 : f32
      %68 = vector.broadcast %cst_38 : f32 to vector<8x1xf32>
      %69 = arith.divf %68, %67 : vector<8x1xf32>
      %70 = arith.addf %60, %69 : vector<8x1xf32>
      %cst_39 = arith.constant 4.000000e+00 : f32
      %71 = vector.broadcast %cst_39 : f32 to vector<8x1xf32>
      %72 = arith.mulf %71, %36 : vector<8x1xf32>
      %cst_40 = arith.constant -7.000000e+00 : f32
      %73 = vector.broadcast %cst_40 : f32 to vector<8x1xf32>
      %74 = arith.mulf %73, %33 : vector<8x1xf32>
      %75 = arith.addf %72, %74 : vector<8x1xf32>
      %cst_41 = arith.constant 9.99999974E-6 : f32
      %76 = vector.broadcast %cst_41 : f32 to vector<8x1xf32>
      %77 = arith.addf %75, %76 : vector<8x1xf32>
      %cst_42 = arith.constant 1.000000e+00 : f32
      %78 = vector.broadcast %cst_42 : f32 to vector<8x1xf32>
      %79 = arith.divf %78, %77 : vector<8x1xf32>
      %80 = arith.addf %70, %79 : vector<8x1xf32>
      %cst_43 = arith.constant 8.000000e+00 : f32
      %81 = vector.broadcast %cst_43 : f32 to vector<8x1xf32>
      %82 = arith.mulf %81, %36 : vector<8x1xf32>
      %cst_44 = arith.constant -1.500000e+01 : f32
      %83 = vector.broadcast %cst_44 : f32 to vector<8x1xf32>
      %84 = arith.mulf %83, %33 : vector<8x1xf32>
      %85 = arith.addf %82, %84 : vector<8x1xf32>
      %cst_45 = arith.constant 9.99999974E-6 : f32
      %86 = vector.broadcast %cst_45 : f32 to vector<8x1xf32>
      %87 = arith.addf %85, %86 : vector<8x1xf32>
      %cst_46 = arith.constant 1.000000e+00 : f32
      %88 = vector.broadcast %cst_46 : f32 to vector<8x1xf32>
      %89 = arith.divf %88, %87 : vector<8x1xf32>
      %90 = arith.addf %80, %89 : vector<8x1xf32>
      %cst_47 = arith.constant 1.600000e+01 : f32
      %91 = vector.broadcast %cst_47 : f32 to vector<8x1xf32>
      %92 = arith.mulf %91, %36 : vector<8x1xf32>
      %cst_48 = arith.constant -3.100000e+01 : f32
      %93 = vector.broadcast %cst_48 : f32 to vector<8x1xf32>
      %94 = arith.mulf %93, %33 : vector<8x1xf32>
      %95 = arith.addf %92, %94 : vector<8x1xf32>
      %cst_49 = arith.constant 9.99999974E-6 : f32
      %96 = vector.broadcast %cst_49 : f32 to vector<8x1xf32>
      %97 = arith.addf %95, %96 : vector<8x1xf32>
      %cst_50 = arith.constant 1.000000e+00 : f32
      %98 = vector.broadcast %cst_50 : f32 to vector<8x1xf32>
      %99 = arith.divf %98, %97 : vector<8x1xf32>
      %100 = arith.addf %90, %99 : vector<8x1xf32>
      %101 = arith.mulf %49, %100 : vector<8x1xf32>
      %cst_51 = arith.constant 2.000000e-01 : f32
      %102 = vector.broadcast %cst_51 : f32 to vector<8x1xf32>
      %103 = arith.mulf %101, %102 : vector<8x1xf32>
      %cst_52 = arith.constant 9.99999974E-6 : f32
      %104 = vector.broadcast %cst_52 : f32 to vector<8x1xf32>
      %105 = arith.addf %42, %104 : vector<8x1xf32>
      %cst_53 = arith.constant 0.000000e+00 : f32
      %106 = vector.broadcast %cst_53 : f32 to vector<8x1xf32>
      %cst_54 = arith.constant 1.000000e+00 : f32
      %107 = vector.broadcast %cst_54 : f32 to vector<8x1xf32>
      %108 = arith.mulf %107, %47 : vector<8x1xf32>
      %cst_55 = arith.constant -1.000000e+00 : f32
      %109 = vector.broadcast %cst_55 : f32 to vector<8x1xf32>
      %110 = arith.mulf %109, %42 : vector<8x1xf32>
      %111 = arith.addf %108, %110 : vector<8x1xf32>
      %cst_56 = arith.constant 9.99999974E-6 : f32
      %112 = vector.broadcast %cst_56 : f32 to vector<8x1xf32>
      %113 = arith.addf %111, %112 : vector<8x1xf32>
      %cst_57 = arith.constant 1.000000e+00 : f32
      %114 = vector.broadcast %cst_57 : f32 to vector<8x1xf32>
      %115 = arith.divf %114, %113 : vector<8x1xf32>
      %116 = arith.addf %106, %115 : vector<8x1xf32>
      %cst_58 = arith.constant 2.000000e+00 : f32
      %117 = vector.broadcast %cst_58 : f32 to vector<8x1xf32>
      %118 = arith.mulf %117, %47 : vector<8x1xf32>
      %cst_59 = arith.constant -3.000000e+00 : f32
      %119 = vector.broadcast %cst_59 : f32 to vector<8x1xf32>
      %120 = arith.mulf %119, %42 : vector<8x1xf32>
      %121 = arith.addf %118, %120 : vector<8x1xf32>
      %cst_60 = arith.constant 9.99999974E-6 : f32
      %122 = vector.broadcast %cst_60 : f32 to vector<8x1xf32>
      %123 = arith.addf %121, %122 : vector<8x1xf32>
      %cst_61 = arith.constant 1.000000e+00 : f32
      %124 = vector.broadcast %cst_61 : f32 to vector<8x1xf32>
      %125 = arith.divf %124, %123 : vector<8x1xf32>
      %126 = arith.addf %116, %125 : vector<8x1xf32>
      %cst_62 = arith.constant 4.000000e+00 : f32
      %127 = vector.broadcast %cst_62 : f32 to vector<8x1xf32>
      %128 = arith.mulf %127, %47 : vector<8x1xf32>
      %cst_63 = arith.constant -7.000000e+00 : f32
      %129 = vector.broadcast %cst_63 : f32 to vector<8x1xf32>
      %130 = arith.mulf %129, %42 : vector<8x1xf32>
      %131 = arith.addf %128, %130 : vector<8x1xf32>
      %cst_64 = arith.constant 9.99999974E-6 : f32
      %132 = vector.broadcast %cst_64 : f32 to vector<8x1xf32>
      %133 = arith.addf %131, %132 : vector<8x1xf32>
      %cst_65 = arith.constant 1.000000e+00 : f32
      %134 = vector.broadcast %cst_65 : f32 to vector<8x1xf32>
      %135 = arith.divf %134, %133 : vector<8x1xf32>
      %136 = arith.addf %126, %135 : vector<8x1xf32>
      %cst_66 = arith.constant 8.000000e+00 : f32
      %137 = vector.broadcast %cst_66 : f32 to vector<8x1xf32>
      %138 = arith.mulf %137, %47 : vector<8x1xf32>
      %cst_67 = arith.constant -1.500000e+01 : f32
      %139 = vector.broadcast %cst_67 : f32 to vector<8x1xf32>
      %140 = arith.mulf %139, %42 : vector<8x1xf32>
      %141 = arith.addf %138, %140 : vector<8x1xf32>
      %cst_68 = arith.constant 9.99999974E-6 : f32
      %142 = vector.broadcast %cst_68 : f32 to vector<8x1xf32>
      %143 = arith.addf %141, %142 : vector<8x1xf32>
      %cst_69 = arith.constant 1.000000e+00 : f32
      %144 = vector.broadcast %cst_69 : f32 to vector<8x1xf32>
      %145 = arith.divf %144, %143 : vector<8x1xf32>
      %146 = arith.addf %136, %145 : vector<8x1xf32>
      %cst_70 = arith.constant 1.600000e+01 : f32
      %147 = vector.broadcast %cst_70 : f32 to vector<8x1xf32>
      %148 = arith.mulf %147, %47 : vector<8x1xf32>
      %cst_71 = arith.constant -3.100000e+01 : f32
      %149 = vector.broadcast %cst_71 : f32 to vector<8x1xf32>
      %150 = arith.mulf %149, %42 : vector<8x1xf32>
      %151 = arith.addf %148, %150 : vector<8x1xf32>
      %cst_72 = arith.constant 9.99999974E-6 : f32
      %152 = vector.broadcast %cst_72 : f32 to vector<8x1xf32>
      %153 = arith.addf %151, %152 : vector<8x1xf32>
      %cst_73 = arith.constant 1.000000e+00 : f32
      %154 = vector.broadcast %cst_73 : f32 to vector<8x1xf32>
      %155 = arith.divf %154, %153 : vector<8x1xf32>
      %156 = arith.addf %146, %155 : vector<8x1xf32>
      %157 = arith.mulf %105, %156 : vector<8x1xf32>
      %cst_74 = arith.constant 2.000000e-01 : f32
      %158 = vector.broadcast %cst_74 : f32 to vector<8x1xf32>
      %159 = arith.mulf %157, %158 : vector<8x1xf32>
      %160 = arith.addf %103, %159 : vector<8x1xf32>
      %cst_75 = arith.constant 5.000000e-01 : f32
      %161 = vector.broadcast %cst_75 : f32 to vector<8x1xf32>
      %162 = arith.mulf %161, %160 : vector<8x1xf32>
      %c0_76 = arith.constant 0 : index
      %c0_77 = arith.constant 0 : index
      %163 = vector.load %arg4[%c0_76, %c0_77] : memref<8x1xf32, #tpu.memory_space<vmem>>, vector<8x1xf32>
      tpu.vector_store %arg4[%c0_76, %c0_77], %162 {strides = array<i32>} : memref<8x1xf32, #tpu.memory_space<vmem>>, vector<8x1xf32>,
    } else {
    }
    return
  }
  func.func @transform_0(%arg0: i32, %arg1: i32) -> (i32, i32) {
    %c0_i32 = arith.constant 0 : i32
    return %arg0, %arg1 : i32, i32
  }
  func.func @transform_1(%arg0: i32, %arg1: i32) -> (i32, i32) {
    %c0_i32 = arith.constant 0 : i32
    return %arg0, %arg1 : i32, i32
  }
  func.func @transform_2(%arg0: i32, %arg1: i32) -> (i32, i32) {
    %c0_i32 = arith.constant 0 : i32
    %c0_i32_0 = arith.constant 0 : i32
    return %arg0, %c0_i32 : i32, i32
  }
}

</mosaic_0001>

<llo_original>
// kernel: tpu_custom_call.1
$region0: #{tpu_custom_call.1}
  #allocation0 [shape = 'u32[]', space=smem, size = 0x4, offset = 0x4, fixed_abs, tag = 'smem constant byte address 0x4 - core index']
  #allocation1 [shape = 'u32[144,128]{1,0:T(1,128)}', space=vmem, size = 0x12000, scoped, tag = 'internal scratch']
  #allocation2 [shape = 'f32[8,128]{1,0:T(8,128)}', space=vmem, size = 0x1000, scoped, tag = 'scratch operand']
  #allocation3 [shape = 'f32[8,128]{1,0:T(8,128)}', space=vmem, size = 0x1000, scoped, tag = 'scratch operand']
  #allocation4 [shape = 'f32[8,128]{1,0:T(8,128)}', space=vmem, size = 0x1000, scoped, tag = 'scratch operand']
  %s0 = inlined_call_operand.hbm [shape: f32[8,256], index: 0, kind: input, shape index: {}]
  %s1 = inlined_call_operand.hbm [shape: f32[8,256], index: 1, kind: input, shape index: {}]
  %s2 = inlined_call_operand.vmem [shape: f32[8,1], index: 2, kind: output, shape index: {}]
  %s3 = sld [smem:[#allocation0]]
  $region34: #{tpu_custom_call.1} parent=0
    _
  %s5 = ssub.s32 1, %s3
  %s6 = scalar_select 0, %s5, %s3
  $region1: #{tpu_custom_call.1} parent=0
    #allocation5 [shape = 'u8[8192]{0}', space=vmem, size = 0x2000, scoped, tag = 'input window, operand 0, single buffered']
    #allocation6 [shape = 's32[1]{0}', space=sflag, size = 0x4, scoped, tag = 'scoped memory for tpu_custom_call.1']
    #allocation7 [shape = 'u8[8192]{0}', space=vmem, size = 0x2000, scoped, tag = 'input window, operand 1, single buffered']
    #allocation8 [shape = 's32[1]{0}', space=sflag, size = 0x4, scoped, tag = 'scoped memory for tpu_custom_call.1']
    %7 = vsyncpa [#allocation6], 0
    %8 = vsyncpa [#allocation8], 0
    // Predicated region
    $region2: #{tpu_custom_call.1} parent=1 // pred_check
      _
    $region3: #{tpu_custom_call.1} parent=1 // pred_check_branch
      %10 = sbr.rel (0) target = $region5
    $region4: #{tpu_custom_call.1} parent=1 // pred_region
      %s12 = ssub.s32 256, 256
      %13 = vsyncadd [#allocation6], %s12
      %s15 = sshll.u32 [#allocation5], 4
      %s16 = int_to_ptr.vmem [resolvable:$true] %s15
      %18 = dma.hbm_to_vmem [thread:$0]  %s0, 256, %s16, [#allocation6]
    $region5: #{tpu_custom_call.1} parent=1 // pred_fallthru
      _
    // Predicated region
    $region6: #{tpu_custom_call.1} parent=1 // pred_check
      _
    $region7: #{tpu_custom_call.1} parent=1 // pred_check_branch
      %20 = sbr.rel (0) target = $region9
    $region8: #{tpu_custom_call.1} parent=1 // pred_region
      %s22 = ssub.s32 256, 256
      %23 = vsyncadd [#allocation8], %s22
      %s25 = sshll.u32 [#allocation7], 4
      %s26 = int_to_ptr.vmem [resolvable:$true] %s25
      %28 = dma.hbm_to_vmem [thread:$0]  %s1, 256, %s26, [#allocation8]
    $region9: #{tpu_custom_call.1} parent=1 // pred_fallthru
      _
    // Predicated region
    $region10: #{tpu_custom_call.1} parent=1 // pred_check
      _
    $region11: #{tpu_custom_call.1} parent=1 // pred_check_branch
      %30 = sbr.rel (0) target = $region13
    $region12: #{tpu_custom_call.1} parent=1 // pred_region
      %31 = dma.done [#allocation6], 256
    $region13: #{tpu_custom_call.1} parent=1 // pred_fallthru
      _
    // Predicated region
    $region14: #{tpu_custom_call.1} parent=1 // pred_check
      _
    $region15: #{tpu_custom_call.1} parent=1 // pred_check_branch
      %33 = sbr.rel (0) target = $region17
    $region16: #{tpu_custom_call.1} parent=1 // pred_region
      %34 = dma.done [#allocation8], 256
    $region17: #{tpu_custom_call.1} parent=1 // pred_fallthru
      _
    %p35 = scmp.eq.s32.totalorder 0, 0
    // Predicated region
    $region18: #{tpu_custom_call.1} parent=1 // pred_check
      %p36 = pneg %p35
    $region19: #{tpu_custom_call.1} parent=1 // pred_check_branch
      %38 = sbr.rel (%p36) target = $region21
    $region20: #{tpu_custom_call.1} parent=1 // pred_region
      %39 = vst [vmem:[#allocation2] sm:$0xff] 0.0
      %40 = vst [vmem:[#allocation3] sm:$0xff] 0.0
      %41 = vst [vmem:[#allocation4] sm:$0xff] 0.0
    $region21: #{tpu_custom_call.1} parent=1 // pred_fallthru
      _
    %v42 = vld [vmem:[#allocation5] sm:$0xff]
    %v43 = vld [vmem:[#allocation5 + $0x8] sm:$0xff]
    %v44 = vld [vmem:[#allocation7] sm:$0xff]
    %v45 = vld [vmem:[#allocation7 + $0x8] sm:$0xff]
    %v46 = vld [vmem:[#allocation2] sm:$0xff]
    %v47 = vmul.f32 %v42, %v44
    %v48 = vmul.f32 %v43, %v45
    %v49 = vadd.f32 %v47, %v48
    %v50 = vadd.f32 %v46, %v49
    %51 = vst [vmem:[#allocation2] sm:$0xff] %v50
    %v52 = vld [vmem:[#allocation3] sm:$0xff]
    %v53 = vmul.f32 %v42, %v42
    %v54 = vmul.f32 %v43, %v43
    %v55 = vmul.f32 %v44, %v44
    %v56 = vmul.f32 %v45, %v45
    %v57 = vadd.f32 %v53, %v55
    %v58 = vadd.f32 %v54, %v56
    %v59 = vadd.f32 %v57, %v58
    %v60 = vadd.f32 %v52, %v59
    %61 = vst [vmem:[#allocation3] sm:$0xff] %v60
    %v62 = vld [vmem:[#allocation4] sm:$0xff]
    %v63 = vadd.f32 %v42, %v44
    %v64 = vadd.f32 %v43, %v45
    %v65 = vadd.f32 %v63, %v64
    %v66 = vadd.f32 %v62, %v65
    %67 = vst [vmem:[#allocation4] sm:$0xff] %v66
    // Predicated region
    $region22: #{tpu_custom_call.1} parent=1 // pred_check
      %p68 = pneg %p35
    $region23: #{tpu_custom_call.1} parent=1 // pred_check_branch
      %70 = sbr.rel (%p68) target = $region25
    $region24: #{tpu_custom_call.1} parent=1 // pred_region
      %v71 = vld [vmem:[#allocation2] sm:$0xff]
      %72 = vadd.xlane.f32.xlu0 %v71
      %v73 = vpop.xlane.xlu0 %72
      %v74 = vld [vmem:[#allocation3] sm:$0xff]
      %75 = vadd.xlane.f32.xlu0 %v74
      %v76 = vpop.xlane.xlu0 %75
      %v77 = vld [vmem:[#allocation4] sm:$0xff]
      %78 = vadd.xlane.f32.xlu0 %v77
      %v79 = vpop.xlane.xlu0 %78
      %v80 = vsub.f32 256.0, %v79
      %v81 = vadd.f32 %v80, %v73
      %v82 = vmul.f32 %v79, 2.0
      %v83 = vsub.f32 512.0, %v82
      %v84 = vadd.f32 %v83, %v76
      %v85 = vadd.f32 %v73, 1e-05
      %v86 = vmul.f32 %v73, -1.0
      %v87 = vadd.f32 %v76, %v86
      %v88 = vadd.f32 %v87, 1e-05
      %v89 = vrcp.pop %v88
      %v90 = vmul.f32 1.0, %v89
      %v91 = vadd.f32 %v90, 0.0
      %v92 = vmul.f32 %v76, 2.0
      %v93 = vmul.f32 %v73, -3.0
      %v94 = vadd.f32 %v92, %v93
      %v95 = vadd.f32 %v94, 1e-05
      %v96 = vrcp.pop %v95
      %v97 = vmul.f32 1.0, %v96
      %v98 = vadd.f32 %v91, %v97
      %v99 = vmul.f32 %v76, 4.0
      %v100 = vmul.f32 %v73, -7.0
      %v101 = vadd.f32 %v99, %v100
      %v102 = vadd.f32 %v101, 1e-05
      %v103 = vrcp.pop %v102
      %v104 = vmul.f32 1.0, %v103
      %v105 = vadd.f32 %v98, %v104
      %v106 = vmul.f32 %v76, 8.0
      %v107 = vmul.f32 %v73, -15.0
      %v108 = vadd.f32 %v106, %v107
      %v109 = vadd.f32 %v108, 1e-05
      %v110 = vrcp.pop %v109
      %v111 = vmul.f32 1.0, %v110
      %v112 = vadd.f32 %v105, %v111
      %v113 = vmul.f32 %v76, 16.0
      %v114 = vmul.f32 %v73, -31.0
      %v115 = vadd.f32 %v113, %v114
      %v116 = vadd.f32 %v115, 1e-05
      %v117 = vrcp.pop %v116
      %v118 = vmul.f32 1.0, %v117
      %v119 = vadd.f32 %v112, %v118
      %v120 = vmul.f32 %v85, %v119
      %v121 = vmul.f32 %v120, 0.2
      %v122 = vadd.f32 %v81, 1e-05
      %v123 = vmul.f32 %v81, -1.0
      %v124 = vadd.f32 %v84, %v123
      %v125 = vadd.f32 %v124, 1e-05
      %v126 = vrcp.pop %v125
      %v127 = vmul.f32 1.0, %v126
      %v128 = vadd.f32 %v127, 0.0
      %v129 = vmul.f32 %v84, 2.0
      %v130 = vmul.f32 %v81, -3.0
      %v131 = vadd.f32 %v129, %v130
      %v132 = vadd.f32 %v131, 1e-05
      %v133 = vrcp.pop %v132
      %v134 = vmul.f32 1.0, %v133
      %v135 = vadd.f32 %v128, %v134
      %v136 = vmul.f32 %v84, 4.0
      %v137 = vmul.f32 %v81, -7.0
      %v138 = vadd.f32 %v136, %v137
      %v139 = vadd.f32 %v138, 1e-05
      %v140 = vrcp.pop %v139
      %v141 = vmul.f32 1.0, %v140
      %v142 = vadd.f32 %v135, %v141
      %v143 = vmul.f32 %v84, 8.0
      %v144 = vmul.f32 %v81, -15.0
      %v145 = vadd.f32 %v143, %v144
      %v146 = vadd.f32 %v145, 1e-05
      %v147 = vrcp.pop %v146
      %v148 = vmul.f32 1.0, %v147
      %v149 = vadd.f32 %v142, %v148
      %v150 = vmul.f32 %v84, 16.0
      %v151 = vmul.f32 %v81, -31.0
      %v152 = vadd.f32 %v150, %v151
      %v153 = vadd.f32 %v152, 1e-05
      %v154 = vrcp.pop %v153
      %v155 = vmul.f32 1.0, %v154
      %v156 = vadd.f32 %v149, %v155
      %v157 = vmul.f32 %v122, %v156
      %v158 = vmul.f32 %v157, 0.2
      %v159 = vadd.f32 %v121, %v158
      %v160 = vmul.f32 %v159, 0.5
      %vm161 = vcmask 7168
      %162 = vst.msk [vmem:[%s2] sm:$0xff] %vm161, %v160
    $region25: #{tpu_custom_call.1} parent=1 // pred_fallthru
      _
    // Predicated region
    $region26: #{tpu_custom_call.1} parent=1 // pred_check
      _
    $region27: #{tpu_custom_call.1} parent=1 // pred_check_branch
      %164 = sbr.rel (0) target = $region29
    $region28: #{tpu_custom_call.1} parent=1 // pred_region
      _
    $region29: #{tpu_custom_call.1} parent=1 // pred_fallthru
      _
    // Predicated region
    $region30: #{tpu_custom_call.1} parent=1 // pred_check
      _
    $region31: #{tpu_custom_call.1} parent=1 // pred_check_branch
      %166 = sbr.rel (0) target = $region33
    $region32: #{tpu_custom_call.1} parent=1 // pred_region
      _
    $region33: #{tpu_custom_call.1} parent=1 // pred_fallthru
      _
    %167 = vsyncpa [#allocation6], 1
    %168 = vsyncpa [#allocation8], 1

</llo_original>
